<compile_context>
chip_gen: v7x
topology: tpu7x:2x2x1
jax: 0.10.0
libtpu: 0.0.40
codegen_flags: <defaults>
</compile_context>

<pallas_src>
import jax
import jax.numpy as jnp
from jax.experimental import pallas as pl
from jax.experimental.pallas import tpu as pltpu

MASK_TOKEN_ID = 13
VOCAB_SIZE = 13
MASK_PROB = 0.15
IGNORE_INDEX = -100

# Integer thresholds over uniform 24-bit integers r in [0, 2^24):
#   P(r < T) = T / 2^24
_SCALE = 1 << 24
T_MASKED = int(round(MASK_PROB * _SCALE))          # rand < 0.15
T_MASK = int(round(MASK_PROB * 0.8 * _SCALE))      # rand < 0.12  -> [MASK]
T_RAND = int(round(MASK_PROB * 0.9 * _SCALE))      # 0.12 <= rand < 0.135 -> random

LANE = 512            # lane-dense last dim (multiple of 128)
MAX_ROWS_PER_TILE = 256   # 256 x 512 x 4 B = 512 KiB per array per buffer


def bert_mask_kernel(x_ref, r_ref, tok_ref, masked_ref, labels_ref):
    x = x_ref[...]          # [rows_per_tile, LANE] int32 token ids
    r = r_ref[...]          # [rows_per_tile, LANE] int32 uniform in [0, 2^24)

    masked_indices = r < T_MASKED

    # labels: original ids at masked positions, ignore_index elsewhere
    labels_ref[...] = jnp.where(masked_indices, x, jnp.int32(IGNORE_INDEX))

    # r < T_MASK already implies masked_indices; no extra AND needed.
    mask_mask = r < T_MASK
    random_mask = (r >= T_MASK) & (r < T_RAND)

    out = jnp.where(mask_mask, jnp.int32(MASK_TOKEN_ID), x)
    out = jnp.where(random_mask, tok_ref[...], out)
    masked_ref[...] = out


def bert_mask_handler(x, key):
    """x: [B, T] int32 token ids; key: jax PRNG key.

    Returns (masked_input_ids [B, T] int32, labels [B, T] int32).
    """
    B, T = x.shape
    N = B * T

    # Lane-dense padded layout: (rows_padded, LANE) with rows_padded a
    # multiple of rows_per_tile (itself a multiple of 8 sublanes).
    rows = pl.cdiv(N, LANE)
    rows_per_tile = min(MAX_ROWS_PER_TILE, ((rows + 7) // 8) * 8)
    num_tiles = pl.cdiv(rows, rows_per_tile)
    rows_padded = num_tiles * rows_per_tile
    n_pad = rows_padded * LANE

    x_flat = x.reshape(-1).astype(jnp.int32)
    x_slab = jnp.pad(x_flat, (0, n_pad - N)).reshape(rows_padded, LANE)

    k1, k2 = jax.random.split(key)
    # uniform 24-bit integers (plays the role of torch.rand thresholds)
    r_slab = jax.random.randint(
        k1, (rows_padded, LANE), 0, _SCALE, dtype=jnp.int32
    )
    # random replacement tokens in [0, vocab_size)
    tok_slab = jax.random.randint(
        k2, (rows_padded, LANE), 0, VOCAB_SIZE, dtype=jnp.int32
    )

    block = (rows_per_tile, LANE)
    idx = lambda i: (i, 0)

    masked_slab, labels_slab = pl.pallas_call(
        bert_mask_kernel,
        out_shape=(
            jax.ShapeDtypeStruct((rows_padded, LANE), jnp.int32),
            jax.ShapeDtypeStruct((rows_padded, LANE), jnp.int32),
        ),
        grid=(num_tiles,),
        in_specs=[
            pl.BlockSpec(block, idx),   # x
            pl.BlockSpec(block, idx),   # uniform ints
            pl.BlockSpec(block, idx),   # random tokens
        ],
        out_specs=(
            pl.BlockSpec(block, idx),
            pl.BlockSpec(block, idx),
        ),
        compiler_params=pltpu.CompilerParams(
            dimension_semantics=("parallel",),
        ),
    )(x_slab, r_slab, tok_slab)

    masked_input_ids = masked_slab.reshape(-1)[:N].reshape(B, T)
    labels = labels_slab.reshape(-1)[:N].reshape(B, T)
    return masked_input_ids, labels


if __name__ == "__main__":
    key = jax.random.PRNGKey(0)
    kx, kmask = jax.random.split(key)

    B, T = 2, 8
    x = jax.random.randint(kx, (B, T), 0, VOCAB_SIZE, dtype=jnp.int32)

    masked_input_ids, labels = bert_mask_handler(x, kmask)
    jax.block_until_ready((masked_input_ids, labels))

    # Sanity checks on the semantics (not on the exact RNG stream).
    mi = jax.device_get(masked_input_ids)
    lb = jax.device_get(labels)
    xs = jax.device_get(x)
    masked_pos = lb != IGNORE_INDEX
    # labels hold the original ids exactly at masked positions
    assert (lb[masked_pos] == xs[masked_pos]).all()
    # unmasked positions are untouched in masked_input_ids
    assert (mi[~masked_pos] == xs[~masked_pos]).all()
    # all output tokens are valid ids (vocab or [MASK])
    assert ((mi >= 0) & (mi <= max(VOCAB_SIZE - 1, MASK_TOKEN_ID))).all()

    print("KERNEL_OK")
</pallas_src>

<mosaic_0001>
module attributes {stable_mosaic.version = 11 : i64} {
  func.func @bert_mask_kernel(%arg0: i32, %arg1: memref<8x512xi32, #tpu.memory_space<vmem>>, %arg2: memref<8x512xi32, #tpu.memory_space<vmem>>, %arg3: memref<8x512xi32, #tpu.memory_space<vmem>>, %arg4: memref<8x512xi32, #tpu.memory_space<vmem>>, %arg5: memref<8x512xi32, #tpu.memory_space<vmem>>) attributes {dimension_semantics = [#tpu.dimension_semantics<parallel>], iteration_bounds = array<i64: 1>, scalar_prefetch = 0 : i64, scratch_operands = 0 : i64, tpu.core_type = #tpu.core_type<tc>, window_params = [{transform_indices = @transform_0, window_bounds = array<i64: 8, 512>}, {transform_indices = @transform_1, window_bounds = array<i64: 8, 512>}, {transform_indices = @transform_2, window_bounds = array<i64: 8, 512>}, {transform_indices = @transform_3, window_bounds = array<i64: 8, 512>}, {transform_indices = @transform_4, window_bounds = array<i64: 8, 512>}]} {
    %c0 = arith.constant 0 : index
    %c0_0 = arith.constant 0 : index
    %0 = vector.load %arg1[%c0, %c0_0] : memref<8x512xi32, #tpu.memory_space<vmem>>, vector<8x512xi32>
    %c0_1 = arith.constant 0 : index
    %c0_2 = arith.constant 0 : index
    %1 = vector.load %arg2[%c0_1, %c0_2] : memref<8x512xi32, #tpu.memory_space<vmem>>, vector<8x512xi32>
    %c2516582_i32 = arith.constant 2516582 : i32
    %2 = vector.broadcast %c2516582_i32 : i32 to vector<8x512xi32>
    %3 = arith.cmpi slt, %1, %2 : vector<8x512xi32>
    %c-100_i32 = arith.constant -100 : i32
    %4 = vector.broadcast %c-100_i32 : i32 to vector<8x512xi32>
    %5 = arith.select %3, %0, %4 : vector<8x512xi1>, vector<8x512xi32>
    %c0_3 = arith.constant 0 : index
    %c0_4 = arith.constant 0 : index
    %6 = vector.load %arg5[%c0_3, %c0_4] : memref<8x512xi32, #tpu.memory_space<vmem>>, vector<8x512xi32>
    tpu.vector_store %arg5[%c0_3, %c0_4], %5 {strides = array<i32>} : memref<8x512xi32, #tpu.memory_space<vmem>>, vector<8x512xi32>,
    %c2013266_i32 = arith.constant 2013266 : i32
    %7 = vector.broadcast %c2013266_i32 : i32 to vector<8x512xi32>
    %8 = arith.cmpi slt, %1, %7 : vector<8x512xi32>
    %c2013266_i32_5 = arith.constant 2013266 : i32
    %9 = vector.broadcast %c2013266_i32_5 : i32 to vector<8x512xi32>
    %10 = arith.cmpi sge, %1, %9 : vector<8x512xi32>
    %c2264924_i32 = arith.constant 2264924 : i32
    %11 = vector.broadcast %c2264924_i32 : i32 to vector<8x512xi32>
    %12 = arith.cmpi slt, %1, %11 : vector<8x512xi32>
    %13 = arith.andi %10, %12 : vector<8x512xi1>
    %c13_i32 = arith.constant 13 : i32
    %14 = vector.broadcast %c13_i32 : i32 to vector<8x512xi32>
    %15 = arith.select %8, %14, %0 : vector<8x512xi1>, vector<8x512xi32>
    %c0_6 = arith.constant 0 : index
    %c0_7 = arith.constant 0 : index
    %16 = vector.load %arg3[%c0_6, %c0_7] : memref<8x512xi32, #tpu.memory_space<vmem>>, vector<8x512xi32>
    %17 = arith.select %13, %16, %15 : vector<8x512xi1>, vector<8x512xi32>
    %c0_8 = arith.constant 0 : index
    %c0_9 = arith.constant 0 : index
    %18 = vector.load %arg4[%c0_8, %c0_9] : memref<8x512xi32, #tpu.memory_space<vmem>>, vector<8x512xi32>
    tpu.vector_store %arg4[%c0_8, %c0_9], %17 {strides = array<i32>} : memref<8x512xi32, #tpu.memory_space<vmem>>, vector<8x512xi32>,
    return
  }
  func.func @transform_0(%arg0: i32) -> (i32, i32) {
    %c0_i32 = arith.constant 0 : i32
    %c0_i32_0 = arith.constant 0 : i32
    return %arg0, %c0_i32 : i32, i32
  }
  func.func @transform_1(%arg0: i32) -> (i32, i32) {
    %c0_i32 = arith.constant 0 : i32
    %c0_i32_0 = arith.constant 0 : i32
    return %arg0, %c0_i32 : i32, i32
  }
  func.func @transform_2(%arg0: i32) -> (i32, i32) {
    %c0_i32 = arith.constant 0 : i32
    %c0_i32_0 = arith.constant 0 : i32
    return %arg0, %c0_i32 : i32, i32
  }
  func.func @transform_3(%arg0: i32) -> (i32, i32) {
    %c0_i32 = arith.constant 0 : i32
    %c0_i32_0 = arith.constant 0 : i32
    return %arg0, %c0_i32 : i32, i32
  }
  func.func @transform_4(%arg0: i32) -> (i32, i32) {
    %c0_i32 = arith.constant 0 : i32
    %c0_i32_0 = arith.constant 0 : i32
    return %arg0, %c0_i32 : i32, i32
  }
}

</mosaic_0001>

<llo_original>
// kernel: tpu_custom_call.1
$region0: #{tpu_custom_call.1}
  #allocation0 [shape = 'u32[]', space=smem, size = 0x4, offset = 0x4, fixed_abs, tag = 'smem constant byte address 0x4 - core index']
  #allocation1 [shape = 'u32[144,128]{1,0:T(1,128)}', space=vmem, size = 0x12000, scoped, tag = 'internal scratch']
  %s0 = inlined_call_operand.hbm [shape: s32[8,512], index: 0, kind: input, shape index: {}]
  %s1 = inlined_call_operand.hbm [shape: s32[8,512], index: 1, kind: input, shape index: {}]
  %s2 = inlined_call_operand.hbm [shape: s32[8,512], index: 2, kind: input, shape index: {}]
  %s3 = inlined_call_operand.hbm [shape: s32[8,512], index: 3, kind: output, shape index: {0}]
  %s4 = inlined_call_operand.hbm [shape: s32[8,512], index: 4, kind: output, shape index: {1}]
  %5 = xla_tuple %s3, %s4
  %s6 = sld [smem:[#allocation0]]
  $region42: #{tpu_custom_call.1} parent=0
    _
  %s8 = ssub.s32 1, %s6
  %s9 = scalar_select 0, %s8, %s6
  $region1: #{tpu_custom_call.1} parent=0
    #allocation2 [shape = 'u8[16384]{0}', space=vmem, size = 0x4000, scoped, tag = 'input window, operand 0, single buffered']
    #allocation3 [shape = 's32[1]{0}', space=sflag, size = 0x4, scoped, tag = 'scoped memory for tpu_custom_call.1']
    #allocation4 [shape = 's32[1]{0}', space=sflag, size = 0x4, scoped, tag = 'scoped memory for tpu_custom_call.1']
    #allocation5 [shape = 'u8[16384]{0}', space=vmem, size = 0x4000, scoped, tag = 'input window, operand 1, single buffered']
    #allocation6 [shape = 's32[1]{0}', space=sflag, size = 0x4, scoped, tag = 'scoped memory for tpu_custom_call.1']
    #allocation7 [shape = 'u8[16384]{0}', space=vmem, size = 0x4000, scoped, tag = 'input window, operand 2, single buffered']
    #allocation8 [shape = 'u8[16384]{0}', space=vmem, size = 0x4000, scoped, tag = 'output window, operand 0, single buffered']
    #allocation9 [shape = 'u8[16384]{0}', space=vmem, size = 0x4000, scoped, tag = 'output window, operand 1, single buffered']
    #allocation10 [shape = 's32[1]{0}', space=sflag, size = 0x4, scoped, tag = 'scoped memory for tpu_custom_call.1']
    %10 = vsyncpa [#allocation3], 0
    %11 = vsyncpa [#allocation6], 0
    %12 = vsyncpa [#allocation4], 0
    %13 = vsyncpa [#allocation10], 0
    // Predicated region
    $region2: #{tpu_custom_call.1} parent=1 // pred_check
      _
    $region3: #{tpu_custom_call.1} parent=1 // pred_check_branch
      %15 = sbr.rel (0) target = $region5
    $region4: #{tpu_custom_call.1} parent=1 // pred_region
      %s17 = ssub.s32 512, 512
      %18 = vsyncadd [#allocation3], %s17
      %s20 = sshll.u32 [#allocation2], 4
      %s21 = int_to_ptr.vmem [resolvable:$true] %s20
      %23 = dma.hbm_to_vmem [thread:$0]  %s0, 512, %s21, [#allocation3]
    $region5: #{tpu_custom_call.1} parent=1 // pred_fallthru
      _
    // Predicated region
    $region6: #{tpu_custom_call.1} parent=1 // pred_check
      _
    $region7: #{tpu_custom_call.1} parent=1 // pred_check_branch
      %25 = sbr.rel (0) target = $region9
    $region8: #{tpu_custom_call.1} parent=1 // pred_region
      %s27 = ssub.s32 512, 512
      %28 = vsyncadd [#allocation6], %s27
      %s30 = sshll.u32 [#allocation5], 4
      %s31 = int_to_ptr.vmem [resolvable:$true] %s30
      %33 = dma.hbm_to_vmem [thread:$0]  %s1, 512, %s31, [#allocation6]
    $region9: #{tpu_custom_call.1} parent=1 // pred_fallthru
      _
    // Predicated region
    $region10: #{tpu_custom_call.1} parent=1 // pred_check
      _
    $region11: #{tpu_custom_call.1} parent=1 // pred_check_branch
      %35 = sbr.rel (0) target = $region13
    $region12: #{tpu_custom_call.1} parent=1 // pred_region
      %s37 = ssub.s32 512, 512
      %38 = vsyncadd [#allocation6], %s37
      %s40 = sshll.u32 [#allocation7], 4
      %s41 = int_to_ptr.vmem [resolvable:$true] %s40
      %43 = dma.hbm_to_vmem [thread:$0]  %s2, 512, %s41, [#allocation6]
    $region13: #{tpu_custom_call.1} parent=1 // pred_fallthru
      _
    // Predicated region
    $region14: #{tpu_custom_call.1} parent=1 // pred_check
      _
    $region15: #{tpu_custom_call.1} parent=1 // pred_check_branch
      %45 = sbr.rel (0) target = $region17
    $region16: #{tpu_custom_call.1} parent=1 // pred_region
      %46 = dma.done [#allocation3], 512
    $region17: #{tpu_custom_call.1} parent=1 // pred_fallthru
      _
    // Predicated region
    $region18: #{tpu_custom_call.1} parent=1 // pred_check
      _
    $region19: #{tpu_custom_call.1} parent=1 // pred_check_branch
      %48 = sbr.rel (0) target = $region21
    $region20: #{tpu_custom_call.1} parent=1 // pred_region
      %49 = dma.done [#allocation6], 512
    $region21: #{tpu_custom_call.1} parent=1 // pred_fallthru
      _
    // Predicated region
    $region22: #{tpu_custom_call.1} parent=1 // pred_check
      _
    $region23: #{tpu_custom_call.1} parent=1 // pred_check_branch
      %51 = sbr.rel (0) target = $region25
    $region24: #{tpu_custom_call.1} parent=1 // pred_region
      %52 = dma.done [#allocation6], 512
    $region25: #{tpu_custom_call.1} parent=1 // pred_fallthru
      _
    %v53 = vld [vmem:[#allocation2] sm:$0xff]
    %v54 = vld [vmem:[#allocation2 + $0x8] sm:$0xff]
    %v55 = vld [vmem:[#allocation2 + $0x10] sm:$0xff]
    %v56 = vld [vmem:[#allocation2 + $0x18] sm:$0xff]
    %v57 = vld [vmem:[#allocation5] sm:$0xff]
    %v58 = vld [vmem:[#allocation5 + $0x8] sm:$0xff]
    %v59 = vld [vmem:[#allocation5 + $0x10] sm:$0xff]
    %v60 = vld [vmem:[#allocation5 + $0x18] sm:$0xff]
    %vm61 = vcmp.lt.s32.totalorder %v57, 2516582
    %vm62 = vcmp.lt.s32.totalorder %v58, 2516582
    %vm63 = vcmp.lt.s32.totalorder %v59, 2516582
    %vm64 = vcmp.lt.s32.totalorder %v60, 2516582
    %v65 = vsel %vm61, %v53, 4294967196
    %v66 = vsel %vm62, %v54, 4294967196
    %v67 = vsel %vm63, %v55, 4294967196
    %v68 = vsel %vm64, %v56, 4294967196
    %69 = vst [vmem:[#allocation9] sm:$0xff] %v65
    %70 = vst [vmem:[#allocation9 + $0x8] sm:$0xff] %v66
    %71 = vst [vmem:[#allocation9 + $0x10] sm:$0xff] %v67
    %72 = vst [vmem:[#allocation9 + $0x18] sm:$0xff] %v68
    %vm73 = vcmp.lt.s32.totalorder %v57, 2013266
    %vm74 = vcmp.lt.s32.totalorder %v58, 2013266
    %vm75 = vcmp.lt.s32.totalorder %v59, 2013266
    %vm76 = vcmp.lt.s32.totalorder %v60, 2013266
    %vm77 = vcmp.ge.s32.totalorder %v57, 2013266
    %vm78 = vcmp.ge.s32.totalorder %v58, 2013266
    %vm79 = vcmp.ge.s32.totalorder %v59, 2013266
    %vm80 = vcmp.ge.s32.totalorder %v60, 2013266
    %vm81 = vcmp.lt.s32.totalorder %v57, 2264924
    %vm82 = vcmp.lt.s32.totalorder %v58, 2264924
    %vm83 = vcmp.lt.s32.totalorder %v59, 2264924
    %vm84 = vcmp.lt.s32.totalorder %v60, 2264924
    %vm85 = vmand %vm77, %vm81
    %vm86 = vmand %vm78, %vm82
    %vm87 = vmand %vm79, %vm83
    %vm88 = vmand %vm80, %vm84
    %v89 = vsel %vm73, 13, %v53
    %v90 = vsel %vm74, 13, %v54
    %v91 = vsel %vm75, 13, %v55
    %v92 = vsel %vm76, 13, %v56
    %v93 = vld [vmem:[#allocation7] sm:$0xff]
    %v94 = vld [vmem:[#allocation7 + $0x8] sm:$0xff]
    %v95 = vld [vmem:[#allocation7 + $0x10] sm:$0xff]
    %v96 = vld [vmem:[#allocation7 + $0x18] sm:$0xff]
    %v97 = vsel %vm85, %v93, %v89
    %v98 = vsel %vm86, %v94, %v90
    %v99 = vsel %vm87, %v95, %v91
    %v100 = vsel %vm88, %v96, %v92
    %101 = vst [vmem:[#allocation8] sm:$0xff] %v97
    %102 = vst [vmem:[#allocation8 + $0x8] sm:$0xff] %v98
    %103 = vst [vmem:[#allocation8 + $0x10] sm:$0xff] %v99
    %104 = vst [vmem:[#allocation8 + $0x18] sm:$0xff] %v100
    // Predicated region
    $region26: #{tpu_custom_call.1} parent=1 // pred_check
      _
    $region27: #{tpu_custom_call.1} parent=1 // pred_check_branch
      %106 = sbr.rel (0) target = $region29
    $region28: #{tpu_custom_call.1} parent=1 // pred_region
      %s108 = ssub.s32 512, 512
      %109 = vsyncadd [#allocation4], %s108
      %s111 = sshll.u32 [#allocation8], 4
      %s112 = int_to_ptr.vmem [resolvable:$true] %s111
      %114 = dma.vmem_to_hbm [thread:$0]  %s112, 512, %s3, [#allocation4]
    $region29: #{tpu_custom_call.1} parent=1 // pred_fallthru
      _
    // Predicated region
    $region30: #{tpu_custom_call.1} parent=1 // pred_check
      _
    $region31: #{tpu_custom_call.1} parent=1 // pred_check_branch
      %116 = sbr.rel (0) target = $region33
    $region32: #{tpu_custom_call.1} parent=1 // pred_region
      %s118 = ssub.s32 512, 512
      %119 = vsyncadd [#allocation10], %s118
      %s121 = sshll.u32 [#allocation9], 4
      %s122 = int_to_ptr.vmem [resolvable:$true] %s121
      %124 = dma.vmem_to_hbm [thread:$0]  %s122, 512, %s4, [#allocation10]
    $region33: #{tpu_custom_call.1} parent=1 // pred_fallthru
      _
    // Predicated region
    $region34: #{tpu_custom_call.1} parent=1 // pred_check
      _
    $region35: #{tpu_custom_call.1} parent=1 // pred_check_branch
      %126 = sbr.rel (0) target = $region37
    $region36: #{tpu_custom_call.1} parent=1 // pred_region
      %127 = dma.done [#allocation4], 512
    $region37: #{tpu_custom_call.1} parent=1 // pred_fallthru
      _
    // Predicated region
    $region38: #{tpu_custom_call.1} parent=1 // pred_check
      _
    $region39: #{tpu_custom_call.1} parent=1 // pred_check_branch
      %129 = sbr.rel (0) target = $region41
    $region40: #{tpu_custom_call.1} parent=1 // pred_region
      %130 = dma.done [#allocation10], 512
    $region41: #{tpu_custom_call.1} parent=1 // pred_fallthru
      _
    %131 = vsyncpa [#allocation3], 1
    %132 = vsyncpa [#allocation6], 1
    %133 = vsyncpa [#allocation4], 1
    %134 = vsyncpa [#allocation10], 1

</llo_original>
